<compile_context>
chip_gen: v5e
topology: v5e:2x2
jax: 0.10.0
libtpu: 0.0.40
codegen_flags: <defaults>
</compile_context>

<pallas_src>
import functools

import jax
import jax.numpy as jnp
from jax.experimental import pallas as pl
from jax.experimental.pallas import tpu as pltpu

LN_EPS = 1e-5  # nn.LayerNorm default
_LANE = 128
_SUBLANE = 8


def _round_up(x, m):
    return (x + m - 1) // m * m


def _prenorm_kernel(x_ref, gamma_ref, beta_ref, w_ref, b_ref, o_ref,
                    *, d_valid, d_pad):
    # x_ref:     (TM, Dp)  tile of tokens (feature axis zero-padded to Dp)
    # gamma_ref: (1, Dp)   LayerNorm weight (zero-padded)
    # beta_ref:  (1, Dp)   LayerNorm bias   (zero-padded)
    # w_ref:     (Dp, Dp)  fn (Linear) weight, (in, out), zero-padded
    # b_ref:     (1, Dp)   fn (Linear) bias   (zero-padded)
    # o_ref:     (TM, Dp)  output tile
    x = x_ref[...].astype(jnp.float32)

    # --- LayerNorm over the last axis (biased variance, like torch) ---
    # Statistics use only the d_valid real features; padded lanes are masked.
    if d_valid != d_pad:
        col = jax.lax.broadcasted_iota(jnp.int32, x.shape, dimension=1)
        mask = col < d_valid
        x = jnp.where(mask, x, 0.0)
        mean = jnp.sum(x, axis=-1, keepdims=True) * (1.0 / d_valid)
        xc = jnp.where(mask, x - mean, 0.0)
    else:
        mean = jnp.mean(x, axis=-1, keepdims=True)
        xc = x - mean
    var = jnp.sum(xc * xc, axis=-1, keepdims=True) * (1.0 / d_valid)
    inv = jax.lax.rsqrt(var + LN_EPS)
    normed = (xc * inv) * gamma_ref[...].astype(jnp.float32) \
        + beta_ref[...].astype(jnp.float32)

    # --- fn: Linear(dim, dim) on the MXU ---
    # Feed the weight in its storage dtype (no f32 widening copy of W);
    # cast the LHS to match. Accumulate in f32.
    y = jnp.dot(normed.astype(w_ref.dtype), w_ref[...],
                preferred_element_type=jnp.float32)
    y = y + b_ref[...].astype(jnp.float32)

    o_ref[...] = y.astype(o_ref.dtype)


@functools.partial(jax.jit, static_argnames=("block_rows",))
def prenorm_linear(x, gamma, beta, w, b, *, block_rows=512):
    """x: (B, N, D); gamma/beta: (D,); w: (D, D) as (in, out); b: (D,)."""
    B, N, D = x.shape
    M = B * N

    # Lane-dense feature axis; padded token axis so any M works.
    Dp = _round_up(D, _LANE)
    tm = min(block_rows, _round_up(M, _SUBLANE))
    Mp = _round_up(M, tm)

    x2 = x.reshape(M, D)
    if Mp != M or Dp != D:
        x2 = jnp.pad(x2, ((0, Mp - M), (0, Dp - D)))
    gamma2 = jnp.pad(gamma, (0, Dp - D)).reshape(1, Dp)
    beta2 = jnp.pad(beta, (0, Dp - D)).reshape(1, Dp)
    wp = jnp.pad(w, ((0, Dp - D), (0, Dp - D)))
    b2 = jnp.pad(b, (0, Dp - D)).reshape(1, Dp)

    kernel = functools.partial(_prenorm_kernel, d_valid=D, d_pad=Dp)

    out = pl.pallas_call(
        kernel,
        out_shape=jax.ShapeDtypeStruct((Mp, Dp), x.dtype),
        grid_spec=pltpu.PrefetchScalarGridSpec(
            num_scalar_prefetch=0,
            grid=(Mp // tm,),
            in_specs=[
                pl.BlockSpec((tm, Dp), lambda i: (i, 0)),   # x tile
                pl.BlockSpec((1, Dp), lambda i: (0, 0)),    # gamma
                pl.BlockSpec((1, Dp), lambda i: (0, 0)),    # beta
                pl.BlockSpec((Dp, Dp), lambda i: (0, 0)),   # W (resident)
                pl.BlockSpec((1, Dp), lambda i: (0, 0)),    # b
            ],
            out_specs=pl.BlockSpec((tm, Dp), lambda i: (i, 0)),
        ),
        compiler_params=pltpu.CompilerParams(
            dimension_semantics=("parallel",),   # row tiles shard across TCs
            vmem_limit_bytes=64 * 1024 * 1024,   # fits v5e/v6e/v7x physical VMEM
        ),
    )(x2, gamma2, beta2, wp, b2)

    if Mp != M or Dp != D:
        out = out[:M, :D]
    return out.reshape(B, N, D)


def _reference(x, gamma, beta, w, b):
    xf = x.astype(jnp.float32)
    mean = jnp.mean(xf, axis=-1, keepdims=True)
    var = jnp.mean((xf - mean) ** 2, axis=-1, keepdims=True)
    normed = (xf - mean) * jax.lax.rsqrt(var + LN_EPS) * gamma + beta
    return normed @ w + b


if __name__ == "__main__":
    key = jax.random.PRNGKey(0)
    B, N, D = 2, 8, 32  # batch, sequence length, hidden dim

    kx, kg, kb, kw, kbi = jax.random.split(key, 5)
    x = jax.random.normal(kx, (B, N, D), dtype=jnp.float32)

    # Deterministic parameter init (synthetic; no checkpoint load).
    gamma = 1.0 + 0.01 * jax.random.normal(kg, (D,), dtype=jnp.float32)
    beta = 0.01 * jax.random.normal(kb, (D,), dtype=jnp.float32)
    w = jax.random.normal(kw, (D, D), dtype=jnp.float32) / jnp.sqrt(D)  # (in, out)
    b = 0.01 * jax.random.normal(kbi, (D,), dtype=jnp.float32)

    out = prenorm_linear(x, gamma, beta, w, b)
    jax.block_until_ready(out)

    ref = _reference(x, gamma, beta, w, b)
    assert out.shape == (B, N, D)
    assert jnp.max(jnp.abs(out - ref)) < 1e-4, "mismatch vs reference"

    print("KERNEL_OK")
</pallas_src>

<mosaic_0001>
module attributes {stable_mosaic.version = 11 : i64} {
  func.func @_prenorm_kernel(%arg0: i32, %arg1: memref<16x128xf32, #tpu.memory_space<vmem>>, %arg2: memref<1x128xf32, #tpu.memory_space<vmem>>, %arg3: memref<1x128xf32, #tpu.memory_space<vmem>>, %arg4: memref<128x128xf32, #tpu.memory_space<vmem>>, %arg5: memref<1x128xf32, #tpu.memory_space<vmem>>, %arg6: memref<16x128xf32, #tpu.memory_space<vmem>>) attributes {dimension_semantics = [#tpu.dimension_semantics<parallel>], iteration_bounds = array<i64: 1>, scalar_prefetch = 0 : i64, scratch_operands = 0 : i64, tpu.core_type = #tpu.core_type<tc>, window_params = [{transform_indices = @transform_0, window_bounds = array<i64: 16, 128>}, {pipeline_mode = #tpu.pipeline_mode<synchronous>, transform_indices = @transform_1, window_bounds = array<i64: 1, 128>}, {pipeline_mode = #tpu.pipeline_mode<synchronous>, transform_indices = @transform_2, window_bounds = array<i64: 1, 128>}, {pipeline_mode = #tpu.pipeline_mode<synchronous>, transform_indices = @transform_3, window_bounds = array<i64: 128, 128>}, {pipeline_mode = #tpu.pipeline_mode<synchronous>, transform_indices = @transform_4, window_bounds = array<i64: 1, 128>}, {transform_indices = @transform_5, window_bounds = array<i64: 16, 128>}]} {
    %c0 = arith.constant 0 : index
    %c0_0 = arith.constant 0 : index
    %0 = vector.load %arg1[%c0, %c0_0] : memref<16x128xf32, #tpu.memory_space<vmem>>, vector<16x128xf32>
    %1 = tpu.iota {dimensions = array<i32: 1>} : vector<16x128xi32>
    %c32_i32 = arith.constant 32 : i32
    %2 = vector.broadcast %c32_i32 : i32 to vector<16x128xi32>
    %3 = arith.cmpi slt, %1, %2 : vector<16x128xi32>
    %cst = arith.constant 0.000000e+00 : f32
    %4 = vector.broadcast %cst : f32 to vector<16x128xf32>
    %5 = arith.select %3, %0, %4 : vector<16x128xi1>, vector<16x128xf32>
    %cst_1 = arith.constant dense<0.000000e+00> : vector<16xf32>
    %6 = vector.multi_reduction <add>, %5, %cst_1 [1] : vector<16x128xf32> to vector<16xf32>
    %7 = vector.shape_cast %6 : vector<16xf32> to vector<16x1xf32>
    %cst_2 = arith.constant 3.125000e-02 : f32
    %8 = vector.broadcast %cst_2 : f32 to vector<16x1xf32>
    %9 = arith.mulf %7, %8 : vector<16x1xf32>
    %10 = vector.broadcast %9 : vector<16x1xf32> to vector<16x128xf32>
    %11 = arith.subf %5, %10 : vector<16x128xf32>
    %cst_3 = arith.constant 0.000000e+00 : f32
    %12 = vector.broadcast %cst_3 : f32 to vector<16x128xf32>
    %13 = arith.select %3, %11, %12 : vector<16x128xi1>, vector<16x128xf32>
    %14 = arith.mulf %13, %13 : vector<16x128xf32>
    %cst_4 = arith.constant dense<0.000000e+00> : vector<16xf32>
    %15 = vector.multi_reduction <add>, %14, %cst_4 [1] : vector<16x128xf32> to vector<16xf32>
    %16 = vector.shape_cast %15 : vector<16xf32> to vector<16x1xf32>
    %cst_5 = arith.constant 3.125000e-02 : f32
    %17 = vector.broadcast %cst_5 : f32 to vector<16x1xf32>
    %18 = arith.mulf %16, %17 : vector<16x1xf32>
    %cst_6 = arith.constant 9.99999974E-6 : f32
    %19 = vector.broadcast %cst_6 : f32 to vector<16x1xf32>
    %20 = arith.addf %18, %19 : vector<16x1xf32>
    %21 = math.rsqrt %20 : vector<16x1xf32>
    %22 = vector.broadcast %21 : vector<16x1xf32> to vector<16x128xf32>
    %23 = arith.mulf %13, %22 : vector<16x128xf32>
    %c0_7 = arith.constant 0 : index
    %c0_8 = arith.constant 0 : index
    %24 = vector.load %arg2[%c0_7, %c0_8] : memref<1x128xf32, #tpu.memory_space<vmem>>, vector<1x128xf32>
    %25 = vector.broadcast %24 : vector<1x128xf32> to vector<16x128xf32>
    %26 = arith.mulf %23, %25 : vector<16x128xf32>
    %c0_9 = arith.constant 0 : index
    %c0_10 = arith.constant 0 : index
    %27 = vector.load %arg3[%c0_9, %c0_10] : memref<1x128xf32, #tpu.memory_space<vmem>>, vector<1x128xf32>
    %28 = vector.broadcast %27 : vector<1x128xf32> to vector<16x128xf32>
    %29 = arith.addf %26, %28 : vector<16x128xf32>
    %c0_11 = arith.constant 0 : index
    %c0_12 = arith.constant 0 : index
    %30 = vector.load %arg4[%c0_11, %c0_12] : memref<128x128xf32, #tpu.memory_space<vmem>>, vector<128x128xf32>
    %cst_13 = arith.constant dense<0.000000e+00> : vector<16x128xf32>
    %31 = tpu.matmul %29, %30, %cst_13 {dimension_numbers = #tpu.dot_dimension_numbers<[1], [0], [0], [1], [0, 0, 1, 1], [], []>} : vector<16x128xf32>, vector<128x128xf32>, vector<16x128xf32> -> vector<16x128xf32>
    %c0_14 = arith.constant 0 : index
    %c0_15 = arith.constant 0 : index
    %32 = vector.load %arg5[%c0_14, %c0_15] : memref<1x128xf32, #tpu.memory_space<vmem>>, vector<1x128xf32>
    %33 = vector.broadcast %32 : vector<1x128xf32> to vector<16x128xf32>
    %34 = arith.addf %31, %33 : vector<16x128xf32>
    %c0_16 = arith.constant 0 : index
    %c0_17 = arith.constant 0 : index
    %35 = vector.load %arg6[%c0_16, %c0_17] : memref<16x128xf32, #tpu.memory_space<vmem>>, vector<16x128xf32>
    tpu.vector_store %arg6[%c0_16, %c0_17], %34 {strides = array<i32>} : memref<16x128xf32, #tpu.memory_space<vmem>>, vector<16x128xf32>,
    return
  }
  func.func @transform_0(%arg0: i32) -> (i32, i32) {
    %c0_i32 = arith.constant 0 : i32
    %c0_i32_0 = arith.constant 0 : i32
    return %arg0, %c0_i32 : i32, i32
  }
  func.func @transform_1(%arg0: i32) -> (i32, i32) {
    %c0_i32 = arith.constant 0 : i32
    %c0_i32_0 = arith.constant 0 : i32
    %c0_i32_1 = arith.constant 0 : i32
    return %c0_i32, %c0_i32_0 : i32, i32
  }
  func.func @transform_2(%arg0: i32) -> (i32, i32) {
    %c0_i32 = arith.constant 0 : i32
    %c0_i32_0 = arith.constant 0 : i32
    %c0_i32_1 = arith.constant 0 : i32
    return %c0_i32, %c0_i32_0 : i32, i32
  }
  func.func @transform_3(%arg0: i32) -> (i32, i32) {
    %c0_i32 = arith.constant 0 : i32
    %c0_i32_0 = arith.constant 0 : i32
    %c0_i32_1 = arith.constant 0 : i32
    return %c0_i32, %c0_i32_0 : i32, i32
  }
  func.func @transform_4(%arg0: i32) -> (i32, i32) {
    %c0_i32 = arith.constant 0 : i32
    %c0_i32_0 = arith.constant 0 : i32
    %c0_i32_1 = arith.constant 0 : i32
    return %c0_i32, %c0_i32_0 : i32, i32
  }
  func.func @transform_5(%arg0: i32) -> (i32, i32) {
    %c0_i32 = arith.constant 0 : i32
    %c0_i32_0 = arith.constant 0 : i32
    return %arg0, %c0_i32 : i32, i32
  }
}

</mosaic_0001>

<llo_original>
// kernel: prenorm_linear.1
$region0: #{prenorm_linear.1}
  #allocation0 [shape = 'u32[]', space=smem, size = 0x4, offset = 0x4, fixed_abs, tag = 'smem constant byte address 0x4 - core index']
  #allocation1 [shape = 'u32[72,128]{1,0:T(1,128)}', space=vmem, size = 0x9000, scoped, tag = 'internal scratch']
  %s0 = inlined_call_operand.vmem [shape: f32[16,128], index: 0, kind: input, shape index: {}]
  %s1 = inlined_call_operand.vmem [shape: f32[1,128], index: 1, kind: input, shape index: {}]
  %s2 = inlined_call_operand.vmem [shape: f32[1,128], index: 2, kind: input, shape index: {}]
  %s3 = inlined_call_operand.vmem [shape: f32[128,128], index: 3, kind: input, shape index: {}]
  %s4 = inlined_call_operand.vmem [shape: f32[1,128], index: 4, kind: input, shape index: {}]
  %s5 = inlined_call_operand.vmem [shape: f32[16,128], index: 5, kind: output, shape index: {}]
  %s6 = sld [smem:[#allocation0]]
  $region30: #{prenorm_linear.1} parent=0
    _
  %s8 = ssub.s32 1, %s6
  %s9 = scalar_select 0, %s8, %s6
  // Predicated region
  $region2: #{prenorm_linear.1} parent=0 // pred_check
    _
  $region3: #{prenorm_linear.1} parent=0 // pred_check_branch
    %11 = sbr.rel (0) target = $region5
  $region4: #{prenorm_linear.1} parent=0 // pred_region
    _
  $region5: #{prenorm_linear.1} parent=0 // pred_fallthru
    _
  // Predicated region
  $region6: #{prenorm_linear.1} parent=0 // pred_check
    _
  $region7: #{prenorm_linear.1} parent=0 // pred_check_branch
    %13 = sbr.rel (0) target = $region9
  $region8: #{prenorm_linear.1} parent=0 // pred_region
    _
  $region9: #{prenorm_linear.1} parent=0 // pred_fallthru
    _
  // Predicated region
  $region10: #{prenorm_linear.1} parent=0 // pred_check
    _
  $region11: #{prenorm_linear.1} parent=0 // pred_check_branch
    %15 = sbr.rel (0) target = $region13
  $region12: #{prenorm_linear.1} parent=0 // pred_region
    _
  $region13: #{prenorm_linear.1} parent=0 // pred_fallthru
    _
  // Predicated region
  $region14: #{prenorm_linear.1} parent=0 // pred_check
    _
  $region15: #{prenorm_linear.1} parent=0 // pred_check_branch
    %17 = sbr.rel (0) target = $region17
  $region16: #{prenorm_linear.1} parent=0 // pred_region
    _
  $region17: #{prenorm_linear.1} parent=0 // pred_fallthru
    _
  // Predicated region
  $region18: #{prenorm_linear.1} parent=0 // pred_check
    _
  $region19: #{prenorm_linear.1} parent=0 // pred_check_branch
    %19 = sbr.rel (0) target = $region21
  $region20: #{prenorm_linear.1} parent=0 // pred_region
    _
  $region21: #{prenorm_linear.1} parent=0 // pred_fallthru
    _
  %v20 = vld [vmem:[%s0] sm:$0xff]
  %v21 = vld [vmem:[%s0 + $0x8] sm:$0xff]
  %v22 = vlaneseq
  %v23 = vand.u32 %v22, 127
  %vm24 = vcmp.lt.s32.totalorder %v23, 32
  %v25 = vsel %vm24, %v20, 0.0
  %v26 = vsel %vm24, %v21, 0.0
  %27 = vadd.xlane.f32.xlu0 %v25
  %v28 = vpop.xlane.xlu0 %27
  %29 = vadd.xlane.f32.xlu0 %v26
  %v30 = vpop.xlane.xlu0 %29
  %v31 = vmul.f32 %v28, 0.03125
  %v32 = vmul.f32 %v30, 0.03125
  %v33 = vsub.f32 %v25, %v31
  %v34 = vsub.f32 %v26, %v32
  %v35 = vsel %vm24, %v33, 0.0
  %v36 = vsel %vm24, %v34, 0.0
  %v37 = vmul.f32 %v35, %v35
  %v38 = vmul.f32 %v36, %v36
  %39 = vadd.xlane.f32.xlu0 %v37
  %v40 = vpop.xlane.xlu0 %39
  %41 = vadd.xlane.f32.xlu0 %v38
  %v42 = vpop.xlane.xlu0 %41
  %v43 = vmul.f32 %v40, 0.03125
  %v44 = vmul.f32 %v42, 0.03125
  %v45 = vadd.f32 %v43, 1e-05
  %v46 = vadd.f32 %v44, 1e-05
  %v47 = vrsqrt.pop %v45
  %v48 = vmul.f32 %v47, %v45
  %v49 = vmul.f32 %v48, %v47
  %v50 = vmul.f32 0.5, %v49
  %v51 = vsub.f32 1.5, %v50
  %v52 = vmul.f32 %v47, %v51
  %vm53 = vweird.f32 %v45
  %vm54 = vweird.f32 %v47
  %vm55 = vmor %vm53, %vm54
  %v56 = vsel %vm55, %v47, %v52
  %v57 = vrsqrt.pop %v46
  %v58 = vmul.f32 %v57, %v46
  %v59 = vmul.f32 %v58, %v57
  %v60 = vmul.f32 0.5, %v59
  %v61 = vsub.f32 1.5, %v60
  %v62 = vmul.f32 %v57, %v61
  %vm63 = vweird.f32 %v46
  %vm64 = vweird.f32 %v57
  %vm65 = vmor %vm63, %vm64
  %v66 = vsel %vm65, %v57, %v62
  %v67 = vmul.f32 %v35, %v56
  %v68 = vmul.f32 %v36, %v66
  %v69 = vld [vmem:[%s1] sm:$0x1]
  %v71 = vperm.slane %v69, 0
  %v73 = vmul.f32 %v67, %v71
  %v74 = vmul.f32 %v68, %v71
  %v75 = vld [vmem:[%s2] sm:$0x1]
  %v77 = vperm.slane %v75, 0
  %v79 = vadd.f32 %v73, %v77
  %v80 = vadd.f32 %v74, %v77
  %v81 = vld [vmem:[%s3] sm:$0xff]
  %v82 = vld [vmem:[%s3 + $0x8] sm:$0xff]
  %v83 = vld [vmem:[%s3 + $0x10] sm:$0xff]
  %v84 = vld [vmem:[%s3 + $0x18] sm:$0xff]
  %v85 = vld [vmem:[%s3 + $0x20] sm:$0xff]
  %v86 = vld [vmem:[%s3 + $0x28] sm:$0xff]
  %v87 = vld [vmem:[%s3 + $0x30] sm:$0xff]
  %v88 = vld [vmem:[%s3 + $0x38] sm:$0xff]
  %v89 = vld [vmem:[%s3 + $0x40] sm:$0xff]
  %v90 = vld [vmem:[%s3 + $0x48] sm:$0xff]
  %v91 = vld [vmem:[%s3 + $0x50] sm:$0xff]
  %v92 = vld [vmem:[%s3 + $0x58] sm:$0xff]
  %v93 = vld [vmem:[%s3 + $0x60] sm:$0xff]
  %v94 = vld [vmem:[%s3 + $0x68] sm:$0xff]
  %v95 = vld [vmem:[%s3 + $0x70] sm:$0xff]
  %v96 = vld [vmem:[%s3 + $0x78] sm:$0xff]
  %v97 = vld [vmem:[%s4] sm:$0x1]
  %v99 = vperm.slane %v97, 0
  %101 = vmatpush.msra.mxu0 %v96
  %102 = vmatpush.msra.mxu0 %v95
  %103 = vmatpush.msra.mxu0 %v94
  %104 = vmatpush.msra.mxu0 %v93
  %105 = vmatpush.msra.mxu0 %v92
  %106 = vmatpush.msra.mxu0 %v91
  %107 = vmatpush.msra.mxu0 %v90
  %108 = vmatpush.msra.mxu0 %v89
  %109 = vmatpush.msra.mxu0 %v88
  %110 = vmatpush.msra.mxu0 %v87
  %111 = vmatpush.msra.mxu0 %v86
  %112 = vmatpush.msra.mxu0 %v85
  %113 = vmatpush.msra.mxu0 %v84
  %114 = vmatpush.msra.mxu0 %v83
  %115 = vmatpush.msra.mxu0 %v82
  %116 = vmatpush.msra.mxu0 %v81
  %117 = vmatmul.f32.gmra.mxu0 %v79
  %v118 = vpop.f32.mrf.mxu0
  %v119 = vadd.f32 %v99, %v118
  %120 = vmatmul.f32.gmra.mxu0 %v80
  %v121 = vpop.f32.mrf.mxu0
  %v122 = vadd.f32 %v99, %v121
  %123 = vdwg.mxu0
  %124 = vst [vmem:[%s5] sm:$0xff] %v119
  %125 = vst [vmem:[%s5 + $0x8] sm:$0xff] %v122
  // Predicated region
  $region22: #{prenorm_linear.1} parent=0 // pred_check
    _
  $region23: #{prenorm_linear.1} parent=0 // pred_check_branch
    %127 = sbr.rel (0) target = $region25
  $region24: #{prenorm_linear.1} parent=0 // pred_region
    _
  $region25: #{prenorm_linear.1} parent=0 // pred_fallthru
    _
  // Predicated region
  $region26: #{prenorm_linear.1} parent=0 // pred_check
    _
  $region27: #{prenorm_linear.1} parent=0 // pred_check_branch
    %129 = sbr.rel (0) target = $region29
  $region28: #{prenorm_linear.1} parent=0 // pred_region
    _
  $region29: #{prenorm_linear.1} parent=0 // pred_fallthru
    _

</llo_original>
